<compile_context>
chip_gen: v7x
topology: tpu7x:2x2x1
jax: 0.10.0
libtpu: 0.0.40
codegen_flags: <defaults>
</compile_context>

<pallas_src>
import math

import jax
import jax.numpy as jnp
from jax.experimental import pallas as pl
from jax.experimental.pallas import tpu as pltpu

NUM_SPLITS = 2            # leading "parallel" grid axis (v7x has 2 TensorCores)
PAD_LOGIT = -1.0e4        # sigmoid -> 0 and bce_elem -> 0 exactly for padded lanes
_BLOCK_BYTES = 2 * 1024 * 1024   # target bytes per input block (f32 worst case)


def _round_up(a, b):
    return (a + b - 1) // b * b


def _rows_per_sample(batch, feat, max_total_rows=64):
    """Smallest R with batch*R a multiple of 8 and R dividing feat.

    Splitting each sample's features over R sublane rows fills the (8, 128)
    vreg instead of leaving 8 - batch sublanes idle on every VPU/EUP op.
    Falls back to R=1 (original layout) if no divisor is found.
    """
    if batch % 8 == 0:
        return 1
    base = 8 // math.gcd(batch, 8)
    r = base
    while r * batch <= max_total_rows:
        if feat % r == 0:
            return r
        r += base
    return 1


def _dice_bce_partials_kernel(x_ref, t_ref, w_ref, out_ref,
                              acc_pt, acc_p, acc_t, acc_bce):
    i = pl.program_id(1)

    @pl.when(i == 0)
    def _init():
        acc_pt[...] = jnp.zeros_like(acc_pt)
        acc_p[...] = jnp.zeros_like(acc_p)
        acc_t[...] = jnp.zeros_like(acc_t)
        acc_bce[...] = jnp.zeros_like(acc_bce)

    x = x_ref[...].astype(jnp.float32)
    t = t_ref[...].astype(jnp.float32)

    # sigmoid via tanh: a single EUP transcendental, stable for all x.
    p = 0.5 * jnp.tanh(0.5 * x) + 0.5

    # Stable log-sigmoid pieces (2 more transcendentals: exp + log1p):
    #   log(sigmoid(x))     = min(x, 0)  - log1p(exp(-|x|))
    #   log(1 - sigmoid(x)) = min(-x, 0) - log1p(exp(-|x|))
    # PyTorch's F.binary_cross_entropy clamps the log terms at -100.
    log1pe = jnp.log1p(jnp.exp(-jnp.abs(x)))
    log_p = jnp.maximum(jnp.minimum(x, 0.0) - log1pe, -100.0)
    log_1mp = jnp.maximum(jnp.minimum(-x, 0.0) - log1pe, -100.0)
    bce_elem = -(t * log_p + (1.0 - t) * log_1mp)

    # Per-row partial sums over this lane tile; the seg_weight mask is applied
    # once at finalize, not per element.
    acc_pt[...] += jnp.sum(p * t, axis=-1, keepdims=True)
    acc_p[...] += jnp.sum(p, axis=-1, keepdims=True)
    acc_t[...] += jnp.sum(t, axis=-1, keepdims=True)
    acc_bce[...] += jnp.sum(bce_elem, axis=-1, keepdims=True)

    @pl.when(i == pl.num_programs(1) - 1)
    def _finalize():
        mask = (w_ref[...].astype(jnp.float32) != 0.0).astype(jnp.float32)  # [rows,1]
        inter = jnp.sum(mask * acc_pt[...], keepdims=True)   # (1, 1)
        psum = jnp.sum(mask * acc_p[...], keepdims=True)
        tsum = jnp.sum(mask * acc_t[...], keepdims=True)
        bsum = jnp.sum(mask * acc_bce[...], keepdims=True)
        lane = jax.lax.broadcasted_iota(jnp.int32, out_ref.shape, 1)
        out_ref[...] = jnp.where(
            lane == 0, inter,
            jnp.where(lane == 1, psum,
                      jnp.where(lane == 2, tsum,
                                jnp.where(lane == 3, bsum, 0.0)))
        ).astype(jnp.float32)


def dice_bce_loss(inputs, targets, seg_weight, smooth=1.0, max_tile_lanes=None):
    B = inputs.shape[0]
    feat = 1
    for d in inputs.shape[1:]:
        feat *= d

    # Sublane packing: each sample occupies R consecutive rows of the 2-D view.
    R = _rows_per_sample(B, feat)
    rows = B * R
    feat_r = feat // R

    x2 = inputs.reshape(rows, feat_r)      # native dtype, free row-major reshape
    t2 = targets.reshape(rows, feat_r)
    w2 = jnp.repeat(seg_weight.reshape(-1), R).reshape(rows, 1)  # per-row mask src

    # Lane tile: ~2 MiB per input block (f32 worst case), multiple of 128,
    # never wider than one split's share of the per-row feature count.
    budget_lanes = max(256, (_BLOCK_BYTES // (4 * rows)) // 128 * 128)
    f_tile = min(_round_up(pl.cdiv(feat_r, NUM_SPLITS), 128), budget_lanes)
    if max_tile_lanes is not None:
        f_tile = min(f_tile, _round_up(max_tile_lanes, 128))
    tiles_per_split = pl.cdiv(feat_r, NUM_SPLITS * f_tile)
    feat_r_pad = NUM_SPLITS * tiles_per_split * f_tile

    if feat_r_pad != feat_r:
        # Padded logits of -1e4 give p == 0 and bce_elem == 0 exactly, so
        # padded lanes contribute nothing to any partial sum.
        x2 = jnp.pad(x2, ((0, 0), (0, feat_r_pad - feat_r)),
                     constant_values=PAD_LOGIT)
        t2 = jnp.pad(t2, ((0, 0), (0, feat_r_pad - feat_r)), constant_values=0)

    cost = pl.CostEstimate(
        flops=int(12 * rows * feat_r_pad),
        transcendentals=int(3 * rows * feat_r_pad),
        bytes_accessed=int(rows * feat_r_pad * (x2.dtype.itemsize + t2.dtype.itemsize)
                           + rows * w2.dtype.itemsize + NUM_SPLITS * 128 * 4),
    )

    partials = pl.pallas_call(
        _dice_bce_partials_kernel,
        out_shape=jax.ShapeDtypeStruct((1, NUM_SPLITS * 128), jnp.float32),
        grid=(NUM_SPLITS, tiles_per_split),
        in_specs=[
            pl.BlockSpec((rows, f_tile), lambda c, i: (0, c * tiles_per_split + i)),
            pl.BlockSpec((rows, f_tile), lambda c, i: (0, c * tiles_per_split + i)),
            pl.BlockSpec((rows, 1), lambda c, i: (0, 0)),
        ],
        out_specs=pl.BlockSpec((1, 128), lambda c, i: (0, c)),
        scratch_shapes=[pltpu.VMEM((rows, 1), jnp.float32) for _ in range(4)],
        compiler_params=pltpu.CompilerParams(
            dimension_semantics=("parallel", "arbitrary")),
        cost_estimate=cost,
    )(x2, t2, w2)

    sums = partials.reshape(NUM_SPLITS, 128)[:, :4].sum(axis=0)
    intersection, p_sum, t_sum, bce_sum = sums[0], sums[1], sums[2], sums[3]

    smooth = jnp.float32(smooth)
    n_selected = jnp.sum((seg_weight != 0).astype(jnp.float32)) * jnp.float32(feat)

    dice_loss = 1.0 - (2.0 * intersection + smooth) / (p_sum + t_sum + smooth)
    bce = bce_sum / n_selected            # nan when no sample is selected

    # torch.nansum on a scalar: nan -> 0
    bce = jnp.where(jnp.isnan(bce), 0.0, bce)
    dice_loss = jnp.where(jnp.isnan(dice_loss), 0.0, dice_loss)
    return bce + dice_loss


def _reference(inputs, targets, seg_weight, smooth=1.0):
    # Pure-JAX masked-reduction reference (same math as the kernel).
    B = inputs.shape[0]
    x = inputs.reshape(B, -1).astype(jnp.float32)
    t = targets.reshape(B, -1).astype(jnp.float32)
    m = (seg_weight != 0).astype(jnp.float32)[:, None]
    p = 0.5 * jnp.tanh(0.5 * x) + 0.5
    log1pe = jnp.log1p(jnp.exp(-jnp.abs(x)))
    log_p = jnp.maximum(jnp.minimum(x, 0.0) - log1pe, -100.0)
    log_1mp = jnp.maximum(jnp.minimum(-x, 0.0) - log1pe, -100.0)
    bce_e = -(t * log_p + (1.0 - t) * log_1mp)
    inter = jnp.sum(p * t * m)
    dice = 1.0 - (2.0 * inter + smooth) / (jnp.sum(p * m) + jnp.sum(t * m) + smooth)
    bce = jnp.sum(bce_e * m) / (jnp.sum(m) * x.shape[1])
    return (jnp.where(jnp.isnan(bce), 0.0, bce)
            + jnp.where(jnp.isnan(dice), 0.0, dice))


if __name__ == "__main__":
    key = jax.random.PRNGKey(0)
    k1, k2 = jax.random.split(key)

    B, C, H, W = 2, 4, 16, 16
    inputs = jax.random.normal(k1, (B, C, H, W), dtype=jnp.float32)          # logits
    targets = (jax.random.uniform(k2, (B, C, H, W)) > 0.5).astype(jnp.float32)

    # Larger (still small) shape to exercise multi-tile accumulation.
    k3, k4 = jax.random.split(k2)
    inputs_big = jax.random.normal(k3, (2, 4, 32, 32), dtype=jnp.float32)
    targets_big = (jax.random.uniform(k4, (2, 4, 32, 32)) > 0.5).astype(jnp.float32)

    # Ragged feature count to exercise the lane-padding path.
    k5, k6 = jax.random.split(k4)
    inputs_rag = jax.random.normal(k5, (2, 3, 10, 10), dtype=jnp.float32)
    targets_rag = (jax.random.uniform(k6, (2, 3, 10, 10)) > 0.5).astype(jnp.float32)

    cases = [
        (inputs, targets, jnp.array([1.0, 0.0], dtype=jnp.float32), None),    # drop sample 1
        (inputs, targets, jnp.array([1.0, 1.0], dtype=jnp.float32), None),    # keep all
        (inputs, targets, jnp.array([0.0, 0.0], dtype=jnp.float32), None),    # empty -> 0
        (inputs_big, targets_big, jnp.array([1.0, 0.0], dtype=jnp.float32), 128),  # multi-tile
        (inputs_rag, targets_rag, jnp.array([0.0, 1.0], dtype=jnp.float32), None), # padded lanes
    ]
    for x, t, seg_weight, max_lanes in cases:
        loss = dice_bce_loss(x, t, seg_weight, smooth=1.0, max_tile_lanes=max_lanes)
        jax.block_until_ready(loss)
        ref = _reference(x, t, seg_weight, smooth=1.0)
        assert jnp.allclose(loss, ref, rtol=1e-5, atol=1e-5), \
            (x.shape, seg_weight, max_lanes, loss, ref)

    print("KERNEL_OK")
</pallas_src>

<mosaic_0001>
module attributes {stable_mosaic.version = 11 : i64} {
  func.func @_dice_bce_partials_kernel(%arg0: i32, %arg1: i32, %arg2: memref<8x128xf32, #tpu.memory_space<vmem>>, %arg3: memref<8x128xf32, #tpu.memory_space<vmem>>, %arg4: memref<8x1xf32, #tpu.memory_space<vmem>>, %arg5: memref<1x128xf32, #tpu.memory_space<vmem>>, %arg6: memref<8x1xf32, #tpu.memory_space<vmem>>, %arg7: memref<8x1xf32, #tpu.memory_space<vmem>>, %arg8: memref<8x1xf32, #tpu.memory_space<vmem>>, %arg9: memref<8x1xf32, #tpu.memory_space<vmem>>) attributes {dimension_semantics = [#tpu.dimension_semantics<parallel>, #tpu.dimension_semantics<arbitrary>], iteration_bounds = array<i64: 2, 1>, scalar_prefetch = 0 : i64, scratch_operands = 4 : i64, tpu.core_type = #tpu.core_type<tc>, window_params = [{transform_indices = @transform_0, window_bounds = array<i64: 8, 128>}, {transform_indices = @transform_1, window_bounds = array<i64: 8, 128>}, {pipeline_mode = #tpu.pipeline_mode<synchronous>, transform_indices = @transform_2, window_bounds = array<i64: 8, 1>}, {transform_indices = @transform_3, window_bounds = array<i64: 1, 128>}]} {
    %c0_i32 = arith.constant 0 : i32
    %0 = arith.cmpi eq, %arg1, %c0_i32 : i32
    %1 = arith.extui %0 : i1 to i32
    %c0_i32_0 = arith.constant 0 : i32
    %2 = arith.cmpi ne, %1, %c0_i32_0 : i32
    scf.if %2 {
      %cst_36 = arith.constant 0.000000e+00 : f32
      %60 = vector.broadcast %cst_36 : f32 to vector<8x1xf32>
      %c0_37 = arith.constant 0 : index
      %c0_38 = arith.constant 0 : index
      %61 = vector.load %arg6[%c0_37, %c0_38] : memref<8x1xf32, #tpu.memory_space<vmem>>, vector<8x1xf32>
      tpu.vector_store %arg6[%c0_37, %c0_38], %60 {strides = array<i32>} : memref<8x1xf32, #tpu.memory_space<vmem>>, vector<8x1xf32>,
      %cst_39 = arith.constant 0.000000e+00 : f32
      %62 = vector.broadcast %cst_39 : f32 to vector<8x1xf32>
      %c0_40 = arith.constant 0 : index
      %c0_41 = arith.constant 0 : index
      %63 = vector.load %arg7[%c0_40, %c0_41] : memref<8x1xf32, #tpu.memory_space<vmem>>, vector<8x1xf32>
      tpu.vector_store %arg7[%c0_40, %c0_41], %62 {strides = array<i32>} : memref<8x1xf32, #tpu.memory_space<vmem>>, vector<8x1xf32>,
      %cst_42 = arith.constant 0.000000e+00 : f32
      %64 = vector.broadcast %cst_42 : f32 to vector<8x1xf32>
      %c0_43 = arith.constant 0 : index
      %c0_44 = arith.constant 0 : index
      %65 = vector.load %arg8[%c0_43, %c0_44] : memref<8x1xf32, #tpu.memory_space<vmem>>, vector<8x1xf32>
      tpu.vector_store %arg8[%c0_43, %c0_44], %64 {strides = array<i32>} : memref<8x1xf32, #tpu.memory_space<vmem>>, vector<8x1xf32>,
      %cst_45 = arith.constant 0.000000e+00 : f32
      %66 = vector.broadcast %cst_45 : f32 to vector<8x1xf32>
      %c0_46 = arith.constant 0 : index
      %c0_47 = arith.constant 0 : index
      %67 = vector.load %arg9[%c0_46, %c0_47] : memref<8x1xf32, #tpu.memory_space<vmem>>, vector<8x1xf32>
      tpu.vector_store %arg9[%c0_46, %c0_47], %66 {strides = array<i32>} : memref<8x1xf32, #tpu.memory_space<vmem>>, vector<8x1xf32>,
    } else {
    }
    %c0 = arith.constant 0 : index
    %c0_1 = arith.constant 0 : index
    %3 = vector.load %arg2[%c0, %c0_1] : memref<8x128xf32, #tpu.memory_space<vmem>>, vector<8x128xf32>
    %c0_2 = arith.constant 0 : index
    %c0_3 = arith.constant 0 : index
    %4 = vector.load %arg3[%c0_2, %c0_3] : memref<8x128xf32, #tpu.memory_space<vmem>>, vector<8x128xf32>
    %cst = arith.constant 5.000000e-01 : f32
    %5 = vector.broadcast %cst : f32 to vector<8x128xf32>
    %6 = arith.mulf %5, %3 : vector<8x128xf32>
    %7 = math.tanh %6 : vector<8x128xf32>
    %cst_4 = arith.constant 5.000000e-01 : f32
    %8 = vector.broadcast %cst_4 : f32 to vector<8x128xf32>
    %9 = arith.mulf %8, %7 : vector<8x128xf32>
    %cst_5 = arith.constant 5.000000e-01 : f32
    %10 = vector.broadcast %cst_5 : f32 to vector<8x128xf32>
    %11 = arith.addf %9, %10 : vector<8x128xf32>
    %12 = math.absf %3 : vector<8x128xf32>
    %cst_6 = arith.constant 0.000000e+00 : f32
    %13 = vector.broadcast %cst_6 : f32 to vector<8x128xf32>
    %14 = arith.subf %13, %12 : vector<8x128xf32>
    %15 = math.exp %14 : vector<8x128xf32>
    %16 = math.log1p %15 : vector<8x128xf32>
    %cst_7 = arith.constant 0.000000e+00 : f32
    %17 = vector.broadcast %cst_7 : f32 to vector<8x128xf32>
    %18 = arith.minimumf %3, %17 : vector<8x128xf32>
    %19 = arith.subf %18, %16 : vector<8x128xf32>
    %cst_8 = arith.constant -1.000000e+02 : f32
    %20 = vector.broadcast %cst_8 : f32 to vector<8x128xf32>
    %21 = arith.maximumf %19, %20 : vector<8x128xf32>
    %cst_9 = arith.constant 0.000000e+00 : f32
    %22 = vector.broadcast %cst_9 : f32 to vector<8x128xf32>
    %23 = arith.subf %22, %3 : vector<8x128xf32>
    %cst_10 = arith.constant 0.000000e+00 : f32
    %24 = vector.broadcast %cst_10 : f32 to vector<8x128xf32>
    %25 = arith.minimumf %23, %24 : vector<8x128xf32>
    %26 = arith.subf %25, %16 : vector<8x128xf32>
    %cst_11 = arith.constant -1.000000e+02 : f32
    %27 = vector.broadcast %cst_11 : f32 to vector<8x128xf32>
    %28 = arith.maximumf %26, %27 : vector<8x128xf32>
    %29 = arith.mulf %4, %21 : vector<8x128xf32>
    %cst_12 = arith.constant 1.000000e+00 : f32
    %30 = vector.broadcast %cst_12 : f32 to vector<8x128xf32>
    %31 = arith.subf %30, %4 : vector<8x128xf32>
    %32 = arith.mulf %31, %28 : vector<8x128xf32>
    %33 = arith.addf %29, %32 : vector<8x128xf32>
    %cst_13 = arith.constant 0.000000e+00 : f32
    %34 = vector.broadcast %cst_13 : f32 to vector<8x128xf32>
    %35 = arith.subf %34, %33 : vector<8x128xf32>
    %c0_14 = arith.constant 0 : index
    %c0_15 = arith.constant 0 : index
    %36 = vector.load %arg6[%c0_14, %c0_15] : memref<8x1xf32, #tpu.memory_space<vmem>>, vector<8x1xf32>
    %37 = arith.mulf %11, %4 : vector<8x128xf32>
    %cst_16 = arith.constant dense<0.000000e+00> : vector<8xf32>
    %38 = vector.multi_reduction <add>, %37, %cst_16 [1] : vector<8x128xf32> to vector<8xf32>
    %39 = vector.shape_cast %38 : vector<8xf32> to vector<8x1xf32>
    %40 = arith.addf %36, %39 : vector<8x1xf32>
    %c0_17 = arith.constant 0 : index
    %c0_18 = arith.constant 0 : index
    %41 = vector.load %arg6[%c0_17, %c0_18] : memref<8x1xf32, #tpu.memory_space<vmem>>, vector<8x1xf32>
    tpu.vector_store %arg6[%c0_17, %c0_18], %40 {strides = array<i32>} : memref<8x1xf32, #tpu.memory_space<vmem>>, vector<8x1xf32>,
    %c0_19 = arith.constant 0 : index
    %c0_20 = arith.constant 0 : index
    %42 = vector.load %arg7[%c0_19, %c0_20] : memref<8x1xf32, #tpu.memory_space<vmem>>, vector<8x1xf32>
    %cst_21 = arith.constant dense<0.000000e+00> : vector<8xf32>
    %43 = vector.multi_reduction <add>, %11, %cst_21 [1] : vector<8x128xf32> to vector<8xf32>
    %44 = vector.shape_cast %43 : vector<8xf32> to vector<8x1xf32>
    %45 = arith.addf %42, %44 : vector<8x1xf32>
    %c0_22 = arith.constant 0 : index
    %c0_23 = arith.constant 0 : index
    %46 = vector.load %arg7[%c0_22, %c0_23] : memref<8x1xf32, #tpu.memory_space<vmem>>, vector<8x1xf32>
    tpu.vector_store %arg7[%c0_22, %c0_23], %45 {strides = array<i32>} : memref<8x1xf32, #tpu.memory_space<vmem>>, vector<8x1xf32>,
    %c0_24 = arith.constant 0 : index
    %c0_25 = arith.constant 0 : index
    %47 = vector.load %arg8[%c0_24, %c0_25] : memref<8x1xf32, #tpu.memory_space<vmem>>, vector<8x1xf32>
    %cst_26 = arith.constant dense<0.000000e+00> : vector<8xf32>
    %48 = vector.multi_reduction <add>, %4, %cst_26 [1] : vector<8x128xf32> to vector<8xf32>
    %49 = vector.shape_cast %48 : vector<8xf32> to vector<8x1xf32>
    %50 = arith.addf %47, %49 : vector<8x1xf32>
    %c0_27 = arith.constant 0 : index
    %c0_28 = arith.constant 0 : index
    %51 = vector.load %arg8[%c0_27, %c0_28] : memref<8x1xf32, #tpu.memory_space<vmem>>, vector<8x1xf32>
    tpu.vector_store %arg8[%c0_27, %c0_28], %50 {strides = array<i32>} : memref<8x1xf32, #tpu.memory_space<vmem>>, vector<8x1xf32>,
    %c0_29 = arith.constant 0 : index
    %c0_30 = arith.constant 0 : index
    %52 = vector.load %arg9[%c0_29, %c0_30] : memref<8x1xf32, #tpu.memory_space<vmem>>, vector<8x1xf32>
    %cst_31 = arith.constant dense<0.000000e+00> : vector<8xf32>
    %53 = vector.multi_reduction <add>, %35, %cst_31 [1] : vector<8x128xf32> to vector<8xf32>
    %54 = vector.shape_cast %53 : vector<8xf32> to vector<8x1xf32>
    %55 = arith.addf %52, %54 : vector<8x1xf32>
    %c0_32 = arith.constant 0 : index
    %c0_33 = arith.constant 0 : index
    %56 = vector.load %arg9[%c0_32, %c0_33] : memref<8x1xf32, #tpu.memory_space<vmem>>, vector<8x1xf32>
    tpu.vector_store %arg9[%c0_32, %c0_33], %55 {strides = array<i32>} : memref<8x1xf32, #tpu.memory_space<vmem>>, vector<8x1xf32>,
    %c0_i32_34 = arith.constant 0 : i32
    %57 = arith.cmpi eq, %arg1, %c0_i32_34 : i32
    %58 = arith.extui %57 : i1 to i32
    %c0_i32_35 = arith.constant 0 : i32
    %59 = arith.cmpi ne, %58, %c0_i32_35 : i32
    scf.if %59 {
      %c0_36 = arith.constant 0 : index
      %c0_37 = arith.constant 0 : index
      %60 = vector.load %arg4[%c0_36, %c0_37] : memref<8x1xf32, #tpu.memory_space<vmem>>, vector<8x1xf32>
      %cst_38 = arith.constant 0.000000e+00 : f32
      %61 = vector.broadcast %cst_38 : f32 to vector<8x1xf32>
      %62 = arith.cmpf one, %60, %61 : vector<8x1xf32>
      %63 = arith.extui %62 : vector<8x1xi1> to vector<8x1xi32>
      %64 = arith.sitofp %63 : vector<8x1xi32> to vector<8x1xf32>
      %c0_39 = arith.constant 0 : index
      %c0_40 = arith.constant 0 : index
      %65 = vector.load %arg6[%c0_39, %c0_40] : memref<8x1xf32, #tpu.memory_space<vmem>>, vector<8x1xf32>
      %66 = arith.mulf %64, %65 : vector<8x1xf32>
      %67 = vector.shape_cast %66 : vector<8x1xf32> to vector<1x8x1xf32>
      %cst_41 = arith.constant dense<0.000000e+00> : vector<1xf32>
      %68 = vector.multi_reduction <add>, %67, %cst_41 [1, 2] : vector<1x8x1xf32> to vector<1xf32>
      %69 = vector.shape_cast %68 : vector<1xf32> to vector<1x1x1xf32>
      %70 = vector.extract %69[0, 0, 0] : f32 from vector<1x1x1xf32>
      %71 = vector.broadcast %70 : f32 to vector<1x1xf32>
      %c0_42 = arith.constant 0 : index
      %c0_43 = arith.constant 0 : index
      %72 = vector.load %arg7[%c0_42, %c0_43] : memref<8x1xf32, #tpu.memory_space<vmem>>, vector<8x1xf32>
      %73 = arith.mulf %64, %72 : vector<8x1xf32>
      %74 = vector.shape_cast %73 : vector<8x1xf32> to vector<1x8x1xf32>
      %cst_44 = arith.constant dense<0.000000e+00> : vector<1xf32>
      %75 = vector.multi_reduction <add>, %74, %cst_44 [1, 2] : vector<1x8x1xf32> to vector<1xf32>
      %76 = vector.shape_cast %75 : vector<1xf32> to vector<1x1x1xf32>
      %77 = vector.extract %76[0, 0, 0] : f32 from vector<1x1x1xf32>
      %78 = vector.broadcast %77 : f32 to vector<1x1xf32>
      %c0_45 = arith.constant 0 : index
      %c0_46 = arith.constant 0 : index
      %79 = vector.load %arg8[%c0_45, %c0_46] : memref<8x1xf32, #tpu.memory_space<vmem>>, vector<8x1xf32>
      %80 = arith.mulf %64, %79 : vector<8x1xf32>
      %81 = vector.shape_cast %80 : vector<8x1xf32> to vector<1x8x1xf32>
      %cst_47 = arith.constant dense<0.000000e+00> : vector<1xf32>
      %82 = vector.multi_reduction <add>, %81, %cst_47 [1, 2] : vector<1x8x1xf32> to vector<1xf32>
      %83 = vector.shape_cast %82 : vector<1xf32> to vector<1x1x1xf32>
      %84 = vector.extract %83[0, 0, 0] : f32 from vector<1x1x1xf32>
      %85 = vector.broadcast %84 : f32 to vector<1x1xf32>
      %c0_48 = arith.constant 0 : index
      %c0_49 = arith.constant 0 : index
      %86 = vector.load %arg9[%c0_48, %c0_49] : memref<8x1xf32, #tpu.memory_space<vmem>>, vector<8x1xf32>
      %87 = arith.mulf %64, %86 : vector<8x1xf32>
      %88 = vector.shape_cast %87 : vector<8x1xf32> to vector<1x8x1xf32>
      %cst_50 = arith.constant dense<0.000000e+00> : vector<1xf32>
      %89 = vector.multi_reduction <add>, %88, %cst_50 [1, 2] : vector<1x8x1xf32> to vector<1xf32>
      %90 = vector.shape_cast %89 : vector<1xf32> to vector<1x1x1xf32>
      %91 = vector.extract %90[0, 0, 0] : f32 from vector<1x1x1xf32>
      %92 = vector.broadcast %91 : f32 to vector<1x1xf32>
      %93 = tpu.iota {dimensions = array<i32: 1>} : vector<1x128xi32>
      %c0_i32_51 = arith.constant 0 : i32
      %94 = vector.broadcast %c0_i32_51 : i32 to vector<1x128xi32>
      %95 = arith.cmpi eq, %93, %94 : vector<1x128xi32>
      %c1_i32 = arith.constant 1 : i32
      %96 = vector.broadcast %c1_i32 : i32 to vector<1x128xi32>
      %97 = arith.cmpi eq, %93, %96 : vector<1x128xi32>
      %c2_i32 = arith.constant 2 : i32
      %98 = vector.broadcast %c2_i32 : i32 to vector<1x128xi32>
      %99 = arith.cmpi eq, %93, %98 : vector<1x128xi32>
      %c3_i32 = arith.constant 3 : i32
      %100 = vector.broadcast %c3_i32 : i32 to vector<1x128xi32>
      %101 = arith.cmpi eq, %93, %100 : vector<1x128xi32>
      %cst_52 = arith.constant 0.000000e+00 : f32
      %102 = vector.shape_cast %92 : vector<1x1xf32> to vector<1x1xf32>
      %103 = vector.broadcast %102 : vector<1x1xf32> to vector<1x128xf32>
      %104 = vector.broadcast %cst_52 : f32 to vector<1x128xf32>
      %105 = arith.select %101, %103, %104 : vector<1x128xi1>, vector<1x128xf32>
      %106 = vector.shape_cast %85 : vector<1x1xf32> to vector<1x1xf32>
      %107 = vector.broadcast %106 : vector<1x1xf32> to vector<1x128xf32>
      %108 = arith.select %99, %107, %105 : vector<1x128xi1>, vector<1x128xf32>
      %109 = vector.shape_cast %78 : vector<1x1xf32> to vector<1x1xf32>
      %110 = vector.broadcast %109 : vector<1x1xf32> to vector<1x128xf32>
      %111 = arith.select %97, %110, %108 : vector<1x128xi1>, vector<1x128xf32>
      %112 = vector.shape_cast %71 : vector<1x1xf32> to vector<1x1xf32>
      %113 = vector.broadcast %112 : vector<1x1xf32> to vector<1x128xf32>
      %114 = arith.select %95, %113, %111 : vector<1x128xi1>, vector<1x128xf32>
      %c0_53 = arith.constant 0 : index
      %c0_54 = arith.constant 0 : index
      %115 = vector.load %arg5[%c0_53, %c0_54] : memref<1x128xf32, #tpu.memory_space<vmem>>, vector<1x128xf32>
      tpu.vector_store %arg5[%c0_53, %c0_54], %114 {strides = array<i32>} : memref<1x128xf32, #tpu.memory_space<vmem>>, vector<1x128xf32>,
    } else {
    }
    return
  }
  func.func @transform_0(%arg0: i32, %arg1: i32) -> (i32, i32) {
    %c1_i32 = arith.constant 1 : i32
    %0 = arith.muli %arg0, %c1_i32 : i32
    %1 = arith.addi %0, %arg1 : i32
    %c0_i32 = arith.constant 0 : i32
    %c0_i32_0 = arith.constant 0 : i32
    return %c0_i32, %1 : i32, i32
  }
  func.func @transform_1(%arg0: i32, %arg1: i32) -> (i32, i32) {
    %c1_i32 = arith.constant 1 : i32
    %0 = arith.muli %arg0, %c1_i32 : i32
    %1 = arith.addi %0, %arg1 : i32
    %c0_i32 = arith.constant 0 : i32
    %c0_i32_0 = arith.constant 0 : i32
    return %c0_i32, %1 : i32, i32
  }
  func.func @transform_2(%arg0: i32, %arg1: i32) -> (i32, i32) {
    %c0_i32 = arith.constant 0 : i32
    %c0_i32_0 = arith.constant 0 : i32
    %c0_i32_1 = arith.constant 0 : i32
    return %c0_i32, %c0_i32_0 : i32, i32
  }
  func.func @transform_3(%arg0: i32, %arg1: i32) -> (i32, i32) {
    %c0_i32 = arith.constant 0 : i32
    %c0_i32_0 = arith.constant 0 : i32
    return %c0_i32, %arg0 : i32, i32
  }
}

</mosaic_0001>

<llo_original>
// kernel: tpu_custom_call.1
$region0: #{tpu_custom_call.1}
  #allocation0 [shape = 'u32[]', space=smem, size = 0x4, offset = 0x4, fixed_abs, tag = 'smem constant byte address 0x4 - core index']
  #allocation1 [shape = 'u32[144,128]{1,0:T(1,128)}', space=vmem, size = 0x12000, scoped, tag = 'internal scratch']
  #allocation2 [shape = 'f32[8,1]{1,0:T(8,128)}', space=vmem, size = 0x1000, scoped, tag = 'scratch operand']
  #allocation3 [shape = 'f32[8,1]{1,0:T(8,128)}', space=vmem, size = 0x1000, scoped, tag = 'scratch operand']
  #allocation4 [shape = 'f32[8,1]{1,0:T(8,128)}', space=vmem, size = 0x1000, scoped, tag = 'scratch operand']
  #allocation5 [shape = 'f32[8,1]{1,0:T(8,128)}', space=vmem, size = 0x1000, scoped, tag = 'scratch operand']
  %s0 = inlined_call_operand.hbm [shape: f32[8,256], index: 0, kind: input, shape index: {}]
  %s1 = inlined_call_operand.hbm [shape: f32[8,256], index: 1, kind: input, shape index: {}]
  %s2 = inlined_call_operand.vmem [shape: f32[8,1], index: 2, kind: input, shape index: {}]
  %s3 = inlined_call_operand.hbm [shape: f32[1,256], index: 3, kind: output, shape index: {}]
  %s4 = sld [smem:[#allocation0]]
  $region61: #{tpu_custom_call.1} parent=0
    _
  %s6 = ssub.s32 1, %s4
  %s7 = scalar_select 0, %s6, %s4
  $region1: #{tpu_custom_call.1} parent=0
    #allocation6 [shape = 'u8[8192]{0}', space=vmem, size = 0x2000, scoped, tag = 'input window, operand 0']
    #allocation7 [shape = 's32[2]{0}', space=sflag, size = 0x8, scoped, tag = 'scoped memory for tpu_custom_call.1']
    #allocation8 [shape = 's32[2]{0}', space=sflag, size = 0x8, scoped, tag = 'scoped memory for tpu_custom_call.1']
    #allocation9 [shape = 'u8[8192]{0}', space=vmem, size = 0x2000, scoped, tag = 'input window, operand 1']
    #allocation10 [shape = 's32[2]{0}', space=sflag, size = 0x8, scoped, tag = 'scoped memory for tpu_custom_call.1']
    #allocation11 [shape = 'u8[1024]{0}', space=vmem, size = 0x400, scoped, tag = 'output window, operand 0']
    %8 = vsyncpa [#allocation7], 0
    %s9 = scalar_lea.sflag [#allocation7], 1
    %10 = vsyncpa %s9, 0
    %11 = vsyncpa [#allocation10], 0
    %s12 = scalar_lea.sflag [#allocation10], 1
    %13 = vsyncpa %s12, 0
    %14 = vsyncpa [#allocation8], 0
    %s15 = scalar_lea.sflag [#allocation8], 1
    %16 = vsyncpa %s15, 0
    loop: start=0, step=1, limit=4
    $region2: #{tpu_custom_call.1} parent=1 // loop_pre_header
      _
    $region3: #{tpu_custom_call.1} parent=1 // loop_header
      %s18 = sphi 0, %s22
      %p19 = scmp.ge.s32.totalorder %s18, 4
      %s25 = sphi 0, %s37
      %s26 = sphi 0, %s33
      %s27 = sphi 0, %s25
      %s28 = sphi 0, %s26
      %s29 = sphi 0, %s27
      %s30 = sphi 0, %s28
      %s42 = sphi 0, %s44
      %s45 = sphi 0, %s42
      %s46 = sphi 0, %s45
      %s62 = sphi 0, %s46
      %s70 = sphi 0, %s72
      %s73 = sphi 0, %s70
      %s74 = sphi 0, %s73
      %s90 = sphi 0, %s74
      %s94 = sphi 0, %s94
      %s96 = sphi 0, %s94
      %s97 = sphi 0, %s96
      %s111 = sphi 0, %s97
      %s117 = sphi 0, %s119
      %s120 = sphi 0, %s117
      %s121 = sphi 0, %s120
      %s137 = sphi 0, %s121
    $region4: #{tpu_custom_call.1} parent=1 // loop_header_branch
      %21 = sbr.rel (%p19) target = $region8
    $region5: #{tpu_custom_call.1} parent=1 // loop_body
      %s23 = ssub.s32 %s18, 1
      %s24 = ssub.s32 %s18, 2
      %s31 = sadd.s32 1, %s26
      %p32 = scmp.ge.s32.totalorder %s31, 1
      %s33 = scalar_select %p32, 0, %s31
      %s34 = sadd.s32 1, %s25
      %s35 = scalar_select %p32, %s34, %s25
      %p36 = scmp.ge.s32.totalorder %s35, 2
      %s37 = scalar_select %p36, 0, %s35
      %s38 = sadd.s32 %s25, %s26
      %s39 = sadd.s32 %s37, %s33
      %s40 = ssub.s32 %s38, %s39
      %p41 = scmp.eq.s32.totalorder %s40, 0
      %s43 = sadd.s32 %s42, 1
      %s44 = scalar_select %p41, %s42, %s43
      %p47 = pneg %p41
      %p48 = scmp.eq.s32.totalorder %s18, 1
      %p49 = por %p47, %p48
      %p50 = scmp.ne.s32.totalorder %s42, %s45
      %p51 = scmp.eq.s32.totalorder %s18, 0
      %p52 = por %p50, %p51
      %p53 = scmp.ne.s32.totalorder %s42, %s45
      %p54 = scmp.eq.s32.totalorder %s23, 1
      %p55 = por %p53, %p54
      %p56 = scmp.ne.s32.totalorder %s45, %s46
      %p57 = scmp.eq.s32.totalorder %s23, 0
      %p58 = por %p56, %p57
      %p59 = scmp.ne.s32.totalorder %s45, %s46
      %p60 = scmp.eq.s32.totalorder %s24, 1
      %p61 = por %p59, %p60
      %p63 = scmp.ne.s32.totalorder %s46, %s62
      %p64 = scmp.eq.s32.totalorder %s24, 0
      %p65 = por %p63, %p64
      %s66 = sadd.s32 %s25, %s26
      %s67 = sadd.s32 %s37, %s33
      %s68 = ssub.s32 %s66, %s67
      %p69 = scmp.eq.s32.totalorder %s68, 0
      %s71 = sadd.s32 %s70, 1
      %s72 = scalar_select %p69, %s70, %s71
      %p75 = pneg %p69
      %p76 = scmp.eq.s32.totalorder %s18, 1
      %p77 = por %p75, %p76
      %p78 = scmp.ne.s32.totalorder %s70, %s73
      %p79 = scmp.eq.s32.totalorder %s18, 0
      %p80 = por %p78, %p79
      %p81 = scmp.ne.s32.totalorder %s70, %s73
      %p82 = scmp.eq.s32.totalorder %s23, 1
      %p83 = por %p81, %p82
      %p84 = scmp.ne.s32.totalorder %s73, %s74
      %p85 = scmp.eq.s32.totalorder %s23, 0
      %p86 = por %p84, %p85
      %p87 = scmp.ne.s32.totalorder %s73, %s74
      %p88 = scmp.eq.s32.totalorder %s24, 1
      %p89 = por %p87, %p88
      %p91 = scmp.ne.s32.totalorder %s74, %s90
      %p92 = scmp.eq.s32.totalorder %s24, 0
      %p93 = por %p91, %p92
      %s95 = sadd.s32 %s94, 1
      %p98 = scmp.eq.s32.totalorder %s18, 1
      %p99 = scmp.ne.s32.totalorder %s94, %s96
      %p100 = scmp.eq.s32.totalorder %s18, 0
      %p101 = por %p99, %p100
      %p102 = scmp.ne.s32.totalorder %s94, %s96
      %p103 = scmp.eq.s32.totalorder %s23, 1
      %p104 = por %p102, %p103
      %p105 = scmp.ne.s32.totalorder %s96, %s97
      %p106 = scmp.eq.s32.totalorder %s23, 0
      %p107 = por %p105, %p106
      %p108 = scmp.ne.s32.totalorder %s96, %s97
      %p109 = scmp.eq.s32.totalorder %s24, 1
      %p110 = por %p108, %p109
      %p112 = scmp.ne.s32.totalorder %s97, %s111
      %p113 = scmp.eq.s32.totalorder %s24, 0
      %p114 = por %p112, %p113
      %s115 = ssub.s32 %s25, %s37
      %p116 = scmp.eq.s32.totalorder %s115, 0
      %s118 = sadd.s32 %s117, 1
      %s119 = scalar_select %p116, %s117, %s118
      %p122 = pneg %p116
      %p123 = scmp.eq.s32.totalorder %s18, 1
      %p124 = por %p122, %p123
      %p125 = scmp.ne.s32.totalorder %s117, %s120
      %p126 = scmp.eq.s32.totalorder %s18, 0
      %p127 = por %p125, %p126
      %p128 = scmp.ne.s32.totalorder %s117, %s120
      %p129 = scmp.eq.s32.totalorder %s23, 1
      %p130 = por %p128, %p129
      %p131 = scmp.ne.s32.totalorder %s120, %s121
      %p132 = scmp.eq.s32.totalorder %s23, 0
      %p133 = por %p131, %p132
      %p134 = scmp.ne.s32.totalorder %s120, %s121
      %p135 = scmp.eq.s32.totalorder %s24, 1
      %p136 = por %p134, %p135
      %p138 = scmp.ne.s32.totalorder %s121, %s137
      %p139 = scmp.eq.s32.totalorder %s24, 0
      %p140 = por %p138, %p139
      %p141 = scmp.le.s32.totalorder 1, %s18
      %p142 = scmp.lt.s32.totalorder %s18, 3
      %p143 = pnand %p141, %p142
      %p144 = pneg %p143
      // Predicated region
      $region9: #{tpu_custom_call.1} parent=5 // pred_check
        _
      $region10: #{tpu_custom_call.1} parent=5 // pred_check_branch
        %146 = sbr.rel (%p143) target = $region12
      $region11: #{tpu_custom_call.1} parent=5 // pred_region
        %s147 = ssub.s32 %s18, 1
        // Predicated region
        $region13: #{tpu_custom_call.1} parent=11 // pred_check
          %p148 = pneg %p107
        $region14: #{tpu_custom_call.1} parent=11 // pred_check_branch
          %150 = sbr.rel (%p148) target = $region16
        $region15: #{tpu_custom_call.1} parent=11 // pred_region
          _
        $region16: #{tpu_custom_call.1} parent=11 // pred_fallthru
          _
      $region12: #{tpu_custom_call.1} parent=5 // pred_fallthru
        _
      %p151 = scmp.lt.s32.totalorder %s18, 2
      // Predicated region
      $region17: #{tpu_custom_call.1} parent=5 // pred_check
        %p152 = pneg %p151
      $region18: #{tpu_custom_call.1} parent=5 // pred_check_branch
        %154 = sbr.rel (%p152) target = $region20
      $region19: #{tpu_custom_call.1} parent=5 // pred_region
        // Predicated region
        $region21: #{tpu_custom_call.1} parent=19 // pred_check
          %p155 = pneg %p52
        $region22: #{tpu_custom_call.1} parent=19 // pred_check_branch
          %157 = sbr.rel (%p155) target = $region24
        $region23: #{tpu_custom_call.1} parent=19 // pred_region
          %s158 = sand.u32 %s42, 1
          %s159 = scalar_lea.sflag [#allocation7], %s158
          %s160 = sand.u32 %s42, 1
          %s161 = smul.addr %s160, 8
          %s162 = scalar_lea.vmem [#allocation6], %s161
          %s163 = sadd.s32 %s25, %s26
          %s165 = ssub.s32 128, 128
          %166 = vsyncadd %s159, %s165
          %s167 = smul.addr %s163, 128
          %s168 = scalar_lea.hbm %s0, %s167
          %s170 = sshll.u32 %s162, 4
          %s171 = int_to_ptr.vmem [resolvable:$true] %s170
          %173 = dma.hbm_to_vmem [thread:$0]  %s168, 128, %s171, %s159
        $region24: #{tpu_custom_call.1} parent=19 // pred_fallthru
          _
        // Predicated region
        $region25: #{tpu_custom_call.1} parent=19 // pred_check
          %p174 = pneg %p80
        $region26: #{tpu_custom_call.1} parent=19 // pred_check_branch
          %176 = sbr.rel (%p174) target = $region28
        $region27: #{tpu_custom_call.1} parent=19 // pred_region
          %s177 = sand.u32 %s70, 1
          %s178 = scalar_lea.sflag [#allocation10], %s177
          %s179 = sand.u32 %s70, 1
          %s180 = smul.addr %s179, 8
          %s181 = scalar_lea.vmem [#allocation9], %s180
          %s182 = sadd.s32 %s25, %s26
          %s184 = ssub.s32 128, 128
          %185 = vsyncadd %s178, %s184
          %s186 = smul.addr %s182, 128
          %s187 = scalar_lea.hbm %s1, %s186
          %s189 = sshll.u32 %s181, 4
          %s190 = int_to_ptr.vmem [resolvable:$true] %s189
          %192 = dma.hbm_to_vmem [thread:$0]  %s187, 128, %s190, %s178
        $region28: #{tpu_custom_call.1} parent=19 // pred_fallthru
          _
      $region20: #{tpu_custom_call.1} parent=5 // pred_fallthru
        _
      %p193 = scmp.le.s32.totalorder 1, %s18
      %p194 = scmp.lt.s32.totalorder %s18, 3
      %p195 = pnand %p193, %p194
      %p196 = pneg %p195
      // Predicated region
      $region29: #{tpu_custom_call.1} parent=5 // pred_check
        _
      $region30: #{tpu_custom_call.1} parent=5 // pred_check_branch
        %198 = sbr.rel (%p195) target = $region32
      $region31: #{tpu_custom_call.1} parent=5 // pred_region
        %s199 = ssub.s32 %s18, 1
        %s200 = sand.u32 %s45, 1
        %s201 = scalar_lea.sflag [#allocation7], %s200
        %s202 = sand.u32 %s45, 1
        %s203 = smul.addr %s202, 8
        %s204 = scalar_lea.vmem [#allocation6], %s203
        // Predicated region
        $region33: #{tpu_custom_call.1} parent=31 // pred_check
          %p205 = pneg %p58
        $region34: #{tpu_custom_call.1} parent=31 // pred_check_branch
          %207 = sbr.rel (%p205) target = $region36
        $region35: #{tpu_custom_call.1} parent=31 // pred_region
          %208 = dma.done %s201, 128
        $region36: #{tpu_custom_call.1} parent=31 // pred_fallthru
          _
        %s209 = sand.u32 %s73, 1
        %s210 = scalar_lea.sflag [#allocation10], %s209
        %s211 = sand.u32 %s73, 1
        %s212 = smul.addr %s211, 8
        %s213 = scalar_lea.vmem [#allocation9], %s212
        // Predicated region
        $region37: #{tpu_custom_call.1} parent=31 // pred_check
          %p214 = pneg %p86
        $region38: #{tpu_custom_call.1} parent=31 // pred_check_branch
          %216 = sbr.rel (%p214) target = $region40
        $region39: #{tpu_custom_call.1} parent=31 // pred_region
          %217 = dma.done %s210, 128
        $region40: #{tpu_custom_call.1} parent=31 // pred_fallthru
          _
        %s218 = sand.u32 %s45, 1
        %s219 = scalar_lea.sflag [#allocation7], %s218
        %s220 = sand.u32 %s45, 1
        %s221 = smul.addr %s220, 8
        %s222 = scalar_lea.vmem [#allocation6], %s221
        %p223 = pneg %p58
        %p224 = pneg %p55
        %s225 = sand.u32 %s73, 1
        %s226 = scalar_lea.sflag [#allocation10], %s225
        %s227 = sand.u32 %s73, 1
        %s228 = smul.addr %s227, 8
        %s229 = scalar_lea.vmem [#allocation9], %s228
        %p230 = pneg %p86
        %p231 = pneg %p83
        %p232 = pneg %p107
        %p233 = pneg %p104
        %p234 = pneg %p133
        %p235 = pneg %p130
        %s236 = sand.u32 %s120, 1
        %s237 = scalar_lea.sflag [#allocation8], %s236
        %s238 = sand.u32 %s120, 1
        %s239 = scalar_lea.vmem [#allocation11], %s238
        %s240 = sadd.s32 %s27, %s28
        %s241 = sadd.s32 %s27, %s28
        %p242 = scmp.eq.s32.totalorder %s28, 0
        // Predicated region
        $region41: #{tpu_custom_call.1} parent=31 // pred_check
          %p243 = pneg %p242
        $region42: #{tpu_custom_call.1} parent=31 // pred_check_branch
          %245 = sbr.rel (%p243) target = $region44
        $region43: #{tpu_custom_call.1} parent=31 // pred_region
          %vm246 = vcmask 7168
          %247 = vst.msk [vmem:[#allocation2] sm:$0xff] %vm246, 0.0
          %248 = vst.msk [vmem:[#allocation3] sm:$0xff] %vm246, 0.0
          %249 = vst.msk [vmem:[#allocation4] sm:$0xff] %vm246, 0.0
          %250 = vst.msk [vmem:[#allocation5] sm:$0xff] %vm246, 0.0
        $region44: #{tpu_custom_call.1} parent=31 // pred_fallthru
          _
        %v251 = vld [vmem:[%s204] sm:$0xff]
        %v252 = vld [vmem:[%s213] sm:$0xff]
        %v253 = vmul.f32 %v251, 0.5
        %v254 = vtanh.pop %v253
        %v255 = vmul.f32 %v254, 0.5
        %v256 = vadd.f32 %v255, 0.5
        %v257 = vand.u32 2147483647, %v251
        %v258 = vsub.f32 0.0, %v257
        %v259 = vmul.f32 %v258, 1.442695
        %v260 = vpow.pop %v259
        %v261 = vadd.f32 %v260, 1.0
        %v262 = vlog2.pop %v261
        %v263 = vmul.f32 %v262, 0.6931472
        %v264 = vmul.f32 -0.5, %v260
        %v265 = vadd.f32 %v264, 1.0
        %v266 = vmul.f32 %v265, %v260
        %v267 = vand.u32 2147483647, %v260
        %vm268 = vcmp.lt.f32.partialorder %v267, 0.0004427343
        %v269 = vsel %vm268, %v266, %v263
        %v270 = vmin.f32 %v251, 0.0
        %v271 = vsub.f32 %v270, %v269
        %v272 = vmax.f32 %v271, -100.0
        %v273 = vsub.f32 0.0, %v251
        %v274 = vmin.f32 %v273, 0.0
        %v275 = vsub.f32 %v274, %v269
        %v276 = vmax.f32 %v275, -100.0
        %v277 = vmul.f32 %v252, %v272
        %v278 = vsub.f32 1.0, %v252
        %v279 = vmul.f32 %v278, %v276
        %v280 = vadd.f32 %v277, %v279
        %v281 = vsub.f32 0.0, %v280
        %v282 = vld [vmem:[#allocation2] sm:$0xff]
        %v283 = vmul.f32 %v256, %v252
        %284 = vadd.xlane.f32.xlu0 %v283
        %v285 = vpop.xlane.xlu0 %284
        %v286 = vadd.f32 %v282, %v285
        %vm287 = vcmask 7168
        %288 = vst.msk [vmem:[#allocation2] sm:$0xff] %vm287, %v286
        %v289 = vld [vmem:[#allocation3] sm:$0xff]
        %290 = vadd.xlane.f32.xlu0 %v256
        %v291 = vpop.xlane.xlu0 %290
        %v292 = vadd.f32 %v289, %v291
        %293 = vst.msk [vmem:[#allocation3] sm:$0xff] %vm287, %v292
        %v294 = vld [vmem:[#allocation4] sm:$0xff]
        %295 = vadd.xlane.f32.xlu0 %v252
        %v296 = vpop.xlane.xlu0 %295
        %v297 = vadd.f32 %v294, %v296
        %298 = vst.msk [vmem:[#allocation4] sm:$0xff] %vm287, %v297
        %v299 = vld [vmem:[#allocation5] sm:$0xff]
        %300 = vadd.xlane.f32.xlu0 %v281
        %v301 = vpop.xlane.xlu0 %300
        %v302 = vadd.f32 %v299, %v301
        %303 = vst.msk [vmem:[#allocation5] sm:$0xff] %vm287, %v302
        // Predicated region
        $region45: #{tpu_custom_call.1} parent=31 // pred_check
          %p304 = pneg %p242
        $region46: #{tpu_custom_call.1} parent=31 // pred_check_branch
          %306 = sbr.rel (%p304) target = $region48
        $region47: #{tpu_custom_call.1} parent=31 // pred_region
          %v307 = vld [vmem:[%s2] sm:$0xff]
          %vm308 = vcmp.ne.f32.partialorder %v307, 0.0
          %v309 = vsel %vm308, 1, 0
          %v310 = vcvt.s32.f32 %v309
          %v311 = vld [vmem:[#allocation2] sm:$0xff]
          %v312 = vmul.f32 %v310, %v311
          %v313 = vsel %vm287, %v312, 0.0
          %314 = vadd.xlane.f32.xlu0 %v313
          %v315 = vpop.xlane.xlu0 %314
          %v316 = vrot.slane %v315, 4
          %v317 = vadd.f32 %v315, %v316
          %v318 = vrot.slane %v317, 2
          %v319 = vadd.f32 %v317, %v318
          %v320 = vrot.slane %v319, 1
          %v321 = vadd.f32 %v319, %v320
          %s322 = vtos %v321
          %v323 = vld [vmem:[#allocation3] sm:$0xff]
          %v324 = vmul.f32 %v310, %v323
          %v325 = vsel %vm287, %v324, 0.0
          %326 = vadd.xlane.f32.xlu0 %v325
          %v327 = vpop.xlane.xlu0 %326
          %v328 = vrot.slane %v327, 4
          %v329 = vadd.f32 %v327, %v328
          %v330 = vrot.slane %v329, 2
          %v331 = vadd.f32 %v329, %v330
          %v332 = vrot.slane %v331, 1
          %v333 = vadd.f32 %v331, %v332
          %s334 = vtos %v333
          %v335 = vld [vmem:[#allocation4] sm:$0xff]
          %v336 = vmul.f32 %v310, %v335
          %v337 = vsel %vm287, %v336, 0.0
          %338 = vadd.xlane.f32.xlu0 %v337
          %v339 = vpop.xlane.xlu0 %338
          %v340 = vrot.slane %v339, 4
          %v341 = vadd.f32 %v339, %v340
          %v342 = vrot.slane %v341, 2
          %v343 = vadd.f32 %v341, %v342
          %v344 = vrot.slane %v343, 1
          %v345 = vadd.f32 %v343, %v344
          %s346 = vtos %v345
          %v347 = vld [vmem:[#allocation5] sm:$0xff]
          %v348 = vmul.f32 %v310, %v347
          %v349 = vsel %vm287, %v348, 0.0
          %350 = vadd.xlane.f32.xlu0 %v349
          %v351 = vpop.xlane.xlu0 %350
          %v352 = vrot.slane %v351, 4
          %v353 = vadd.f32 %v351, %v352
          %v354 = vrot.slane %v353, 2
          %v355 = vadd.f32 %v353, %v354
          %v356 = vrot.slane %v355, 1
          %v357 = vadd.f32 %v355, %v356
          %s358 = vtos %v357
          %v359 = vlaneseq
          %v360 = vand.u32 %v359, 127
          %vm361 = vcmp.eq.s32.totalorder %v360, 0
          %vm362 = vcmp.eq.s32.totalorder %v360, 1
          %vm363 = vcmp.eq.s32.totalorder %v360, 2
          %vm364 = vcmp.eq.s32.totalorder %v360, 3
          %v365 = vstv %s358
          %v366 = vsel %vm364, %v365, 0.0
          %v367 = vstv %s346
          %v368 = vsel %vm363, %v367, %v366
          %v369 = vstv %s334
          %v370 = vsel %vm362, %v369, %v368
          %v371 = vstv %s322
          %v372 = vsel %vm361, %v371, %v370
          %373 = vst [vmem:[%s239] sm:$0x1] %v372
        $region48: #{tpu_custom_call.1} parent=31 // pred_fallthru
          _
        %s374 = sand.u32 %s120, 1
        %s375 = scalar_lea.sflag [#allocation8], %s374
        %s376 = sand.u32 %s120, 1
        %s377 = scalar_lea.vmem [#allocation11], %s376
        // Predicated region
        $region49: #{tpu_custom_call.1} parent=31 // pred_check
          %p378 = pneg %p130
        $region50: #{tpu_custom_call.1} parent=31 // pred_check_branch
          %380 = sbr.rel (%p378) target = $region52
        $region51: #{tpu_custom_call.1} parent=31 // pred_region
          %s382 = ssub.s32 16, 16
          %383 = vsyncadd %s375, %s382
          %s384 = smul.addr %s27, 16
          %s385 = scalar_lea.hbm %s3, %s384
          %s387 = sshll.u32 %s377, 4
          %s388 = int_to_ptr.vmem [resolvable:$true] %s387
          %390 = dma.vmem_to_hbm [thread:$0]  %s388, 16, %s385, %s375
        $region52: #{tpu_custom_call.1} parent=31 // pred_fallthru
          _
      $region32: #{tpu_custom_call.1} parent=5 // pred_fallthru
        _
      %p391 = scmp.le.s32.totalorder 2, %s18
      // Predicated region
      $region53: #{tpu_custom_call.1} parent=5 // pred_check
        %p392 = pneg %p391
      $region54: #{tpu_custom_call.1} parent=5 // pred_check_branch
        %394 = sbr.rel (%p392) target = $region56
      $region55: #{tpu_custom_call.1} parent=5 // pred_region
        %s395 = ssub.s32 %s18, 2
        // Predicated region
        $region57: #{tpu_custom_call.1} parent=55 // pred_check
          %p396 = pneg %p136
        $region58: #{tpu_custom_call.1} parent=55 // pred_check_branch
          %398 = sbr.rel (%p396) target = $region60
        $region59: #{tpu_custom_call.1} parent=55 // pred_region
          %s399 = sand.u32 %s121, 1
          %s400 = scalar_lea.sflag [#allocation8], %s399
          %s401 = sand.u32 %s121, 1
          %s402 = scalar_lea.vmem [#allocation11], %s401
          %403 = dma.done %s400, 16
        $region60: #{tpu_custom_call.1} parent=55 // pred_fallthru
          _
      $region56: #{tpu_custom_call.1} parent=5 // pred_fallthru
        _
    $region6: #{tpu_custom_call.1} parent=1 // loop_footer
      %s22 = sadd.s32 1, %s18
    $region7: #{tpu_custom_call.1} parent=1 // loop_footer_branch
      %17 = sbr.rel target = $region3
    $region8: #{tpu_custom_call.1} parent=1 // loop_exit
      _
    %404 = vsyncpa [#allocation7], 1
    %s405 = scalar_lea.sflag [#allocation7], 1
    %406 = vsyncpa %s405, 1
    %407 = vsyncpa [#allocation10], 1
    %s408 = scalar_lea.sflag [#allocation10], 1
    %409 = vsyncpa %s408, 1
    %410 = vsyncpa [#allocation8], 1
    %s411 = scalar_lea.sflag [#allocation8], 1
    %412 = vsyncpa %s411, 1

</llo_original>
